<compile_context>
chip_gen: v5e
topology: v5e:2x2
jax: 0.10.0
libtpu: 0.0.40
codegen_flags: <defaults>
</compile_context>

<pallas_src>
import functools

import jax
import jax.numpy as jnp
from jax.experimental import pallas as pl
from jax.experimental.pallas import tpu as pltpu

LANE = 128       # hidden lane width: pad weight output dims to this
OUT_LANE = 128   # lane-dense output width: [probs | value | zeros]


def _default_tile_b():
    """Per-generation batch-tile cap (v5e has a 16 MiB scoped-VMEM default)."""
    try:
        kind = jax.devices()[0].device_kind.lower()
    except Exception:
        return 2048
    if "v5" in kind and ("lite" in kind or "5e" in kind):
        return 2048
    return 4096


def actor_critic_kernel(x_ref, wf_ref, bf_ref, whid_ref, bhid_ref,
                        wout_ref, bout_ref, out_ref, *, a_dim):
    x = x_ref[...]                                         # bf16 [tb, state_dim]

    # ---- feature network: Linear(state_dim -> 128-padded) + ReLU ----
    feat = jnp.dot(x, wf_ref[...],
                   preferred_element_type=jnp.float32) + bf_ref[...]
    feat = jnp.maximum(feat, 0.0)

    # ---- fused actor/critic hidden layer: h = [a_h | c_h | zeros] ----
    h = jnp.dot(feat.astype(jnp.bfloat16), whid_ref[...],
                preferred_element_type=jnp.float32) + bhid_ref[...]
    h = jnp.maximum(h, 0.0)

    # ---- fused block-diagonal output head (lane-dense 128 cols) ----
    #      z = [logits (A cols) | value (1 col) | zeros]
    z = jnp.dot(h.astype(jnp.bfloat16), wout_ref[...],
                preferred_element_type=jnp.float32) + bout_ref[...]

    col = jax.lax.broadcasted_iota(jnp.int32, z.shape, 1)
    is_logit = col < a_dim

    # numerically stable softmax over the logit columns only (exact reciprocal:
    # the kernel has huge compute slack, exactness is free)
    m = jnp.max(jnp.where(is_logit, z, jnp.float32(-1e30)), axis=-1, keepdims=True)
    e = jnp.where(is_logit, jnp.exp(z - m), 0.0)
    s = jnp.sum(e, axis=-1, keepdims=True)
    probs = e / s

    # cols [0, A): probs; col A: raw critic value; cols > A: z (== 0)
    out_ref[...] = jnp.where(is_logit, probs, z)


def pack_params(p):
    """Fuse + lane-pad the raw per-layer params into kernel form (weights bf16)."""
    state_dim, h0 = p["w_f"].shape
    h1 = p["w_a1"].shape[1]
    a_dim = p["w_a2"].shape[1]
    assert h0 <= LANE and 2 * h1 <= LANE and a_dim + 1 <= OUT_LANE

    wf = jnp.zeros((state_dim, LANE), jnp.float32).at[:, :h0].set(p["w_f"])
    bf = jnp.zeros((1, LANE), jnp.float32).at[:, :h0].set(p["b_f"])

    whid = jnp.zeros((LANE, LANE), jnp.float32)
    whid = whid.at[:h0, :h1].set(p["w_a1"]).at[:h0, h1:2 * h1].set(p["w_c1"])
    bhid = jnp.zeros((1, LANE), jnp.float32)
    bhid = bhid.at[:, :h1].set(p["b_a1"]).at[:, h1:2 * h1].set(p["b_c1"])

    wout = jnp.zeros((LANE, OUT_LANE), jnp.float32)
    wout = wout.at[:h1, :a_dim].set(p["w_a2"])
    wout = wout.at[h1:2 * h1, a_dim:a_dim + 1].set(p["w_c2"])
    bout = jnp.zeros((1, OUT_LANE), jnp.float32)
    bout = bout.at[:, :a_dim].set(p["b_a2"])
    bout = bout.at[:, a_dim:a_dim + 1].set(p["b_c2"])

    # Weights bf16 (MXU-native); biases stay f32 (added after f32 accumulation).
    return {"wf": wf.astype(jnp.bfloat16), "bf": bf,
            "whid": whid.astype(jnp.bfloat16), "bhid": bhid,
            "wout": wout.astype(jnp.bfloat16), "bout": bout,
            "action_dim": a_dim}


def actor_critic_forward(x, packed, tile_b=None):
    """x: [B, state_dim] f32.  Returns (probs [B, A], value [B, 1])."""
    B, state_dim = x.shape
    a_dim = packed["action_dim"]
    if tile_b is None:
        tile_b = _default_tile_b()

    # batch tile: cap at tile_b, keep it a sublane (8) multiple, and never
    # bigger than ~half the batch so large batches give >= 2 grid steps
    # (lets the "parallel" axis shard across v7x's 2 TensorCores).
    half = max(8, ((pl.cdiv(B, 2) + 7) // 8) * 8)
    tb = min(tile_b, half)
    grid = pl.cdiv(B, tb)
    b_pad = grid * tb

    x = x.astype(jnp.bfloat16)
    if b_pad != B:
        # NOTE: padded rows produce softmax-of-bias garbage; they are sliced
        # off below and must never be reused.
        x = jnp.pad(x, ((0, b_pad - B), (0, 0)))

    # VMEM budget: double-buffered out + x, resident weights, and roughly six
    # f32 [tb, 128] intermediates; give ~2x headroom, clamp to a safe range.
    w_bytes = sum(int(packed[k].size) * packed[k].dtype.itemsize
                  for k in ("wf", "bf", "whid", "bhid", "wout", "bout"))
    footprint = (2 * tb * OUT_LANE * 4 + 2 * tb * state_dim * 2
                 + w_bytes + 6 * tb * OUT_LANE * 4)
    vmem_limit = int(min(max(32 << 20, 2 * footprint), 48 << 20))

    flops = 2 * b_pad * (state_dim * LANE + LANE * LANE + LANE * OUT_LANE)
    bytes_accessed = b_pad * (state_dim * 2 + OUT_LANE * 4) + w_bytes
    transcendentals = b_pad * OUT_LANE

    const = lambda i: (0, 0)
    kernel = functools.partial(actor_critic_kernel, a_dim=a_dim)

    out = pl.pallas_call(
        kernel,
        out_shape=jax.ShapeDtypeStruct((b_pad, OUT_LANE), jnp.float32),
        grid=(grid,),
        in_specs=[
            pl.BlockSpec((tb, state_dim), lambda i: (i, 0)),   # x: streamed per tile
            pl.BlockSpec(packed["wf"].shape, const),           # weights: VMEM-resident
            pl.BlockSpec(packed["bf"].shape, const),           # (constant block index
            pl.BlockSpec(packed["whid"].shape, const),          #  -> no re-DMA)
            pl.BlockSpec(packed["bhid"].shape, const),
            pl.BlockSpec(packed["wout"].shape, const),
            pl.BlockSpec(packed["bout"].shape, const),
        ],
        out_specs=pl.BlockSpec((tb, OUT_LANE), lambda i: (i, 0)),
        compiler_params=pltpu.CompilerParams(
            dimension_semantics=("parallel",),
            vmem_limit_bytes=vmem_limit),
        cost_estimate=pl.CostEstimate(flops=flops,
                                      transcendentals=transcendentals,
                                      bytes_accessed=bytes_accessed),
    )(x, packed["wf"], packed["bf"], packed["whid"], packed["bhid"],
      packed["wout"], packed["bout"])

    return out[:B, :a_dim], out[:B, a_dim:a_dim + 1]


def init_params(key, state_dim, hidden_layers, action_dim):
    """Deterministic synthetic params. Weights stored as [in_dim, out_dim]."""
    ks = jax.random.split(key, 10)
    h0, h1 = hidden_layers[0], hidden_layers[1]

    def w(k, i, o):
        return jax.random.normal(k, (i, o), dtype=jnp.float32) * 0.1

    def b(k, o):
        return jax.random.normal(k, (1, o), dtype=jnp.float32) * 0.01

    return {
        "w_f":  w(ks[0], state_dim, h0),  "b_f":  b(ks[1], h0),
        "w_a1": w(ks[2], h0, h1),         "b_a1": b(ks[3], h1),
        "w_a2": w(ks[4], h1, action_dim), "b_a2": b(ks[5], action_dim),
        "w_c1": w(ks[6], h0, h1),         "b_c1": b(ks[7], h1),
        "w_c2": w(ks[8], h1, 1),          "b_c2": b(ks[9], 1),
    }


def _reference(x, p):
    feat = jnp.maximum(x @ p["w_f"] + p["b_f"], 0.0)
    a_h = jnp.maximum(feat @ p["w_a1"] + p["b_a1"], 0.0)
    probs = jax.nn.softmax(a_h @ p["w_a2"] + p["b_a2"], axis=-1)
    c_h = jnp.maximum(feat @ p["w_c1"] + p["b_c1"], 0.0)
    value = c_h @ p["w_c2"] + p["b_c2"]
    return probs, value


def _check(x, params, packed):
    probs, value = actor_critic_forward(x, packed)
    jax.block_until_ready((probs, value))
    ref_probs, ref_value = _reference(x, params)
    B, a_dim = ref_probs.shape
    assert probs.shape == (B, a_dim) and value.shape == (B, 1)
    # bf16 weights/activations in the kernel -> loosened tolerances vs f32 ref
    assert jnp.allclose(probs, ref_probs, atol=2e-2)
    assert jnp.allclose(jnp.sum(probs, axis=-1), 1.0, atol=1e-5)
    assert jnp.allclose(value, ref_value, atol=2e-2)


if __name__ == "__main__":
    state_dim, action_dim = 8, 4
    hidden_layers = [32, 32]

    key = jax.random.PRNGKey(0)
    k_x, k_p, k_x2 = jax.random.split(key, 3)
    params = init_params(k_p, state_dim, hidden_layers, action_dim)
    packed = pack_params(params)

    # small batch (single grid step, tile rounded up to 8 rows)
    x_small = jax.random.normal(k_x, (2, state_dim), dtype=jnp.float32)
    _check(x_small, params, packed)

    # larger, non-multiple batch to exercise the multi-step grid + padding path
    x_big = jax.random.normal(k_x2, (1000, state_dim), dtype=jnp.float32)
    _check(x_big, params, packed)

    # TODO(synk): the PyTorch act() method (Categorical sampling / argmax) is
    # policy-side logic outside forward() and is not implemented here.

    print("KERNEL_OK")
</pallas_src>

<mosaic_0001>
module attributes {stable_mosaic.version = 11 : i64} {
  func.func @actor_critic_kernel(%arg0: i32, %arg1: memref<8x8xbf16, #tpu.memory_space<vmem>>, %arg2: memref<8x128xbf16, #tpu.memory_space<vmem>>, %arg3: memref<1x128xf32, #tpu.memory_space<vmem>>, %arg4: memref<128x128xbf16, #tpu.memory_space<vmem>>, %arg5: memref<1x128xf32, #tpu.memory_space<vmem>>, %arg6: memref<128x128xbf16, #tpu.memory_space<vmem>>, %arg7: memref<1x128xf32, #tpu.memory_space<vmem>>, %arg8: memref<8x128xf32, #tpu.memory_space<vmem>>) attributes {dimension_semantics = [#tpu.dimension_semantics<parallel>], iteration_bounds = array<i64: 1>, scalar_prefetch = 0 : i64, scratch_operands = 0 : i64, tpu.core_type = #tpu.core_type<tc>, window_params = [{transform_indices = @transform_0, window_bounds = array<i64: 8, 8>}, {pipeline_mode = #tpu.pipeline_mode<synchronous>, transform_indices = @transform_1, window_bounds = array<i64: 8, 128>}, {pipeline_mode = #tpu.pipeline_mode<synchronous>, transform_indices = @transform_2, window_bounds = array<i64: 1, 128>}, {pipeline_mode = #tpu.pipeline_mode<synchronous>, transform_indices = @transform_3, window_bounds = array<i64: 128, 128>}, {pipeline_mode = #tpu.pipeline_mode<synchronous>, transform_indices = @transform_4, window_bounds = array<i64: 1, 128>}, {pipeline_mode = #tpu.pipeline_mode<synchronous>, transform_indices = @transform_5, window_bounds = array<i64: 128, 128>}, {pipeline_mode = #tpu.pipeline_mode<synchronous>, transform_indices = @transform_6, window_bounds = array<i64: 1, 128>}, {transform_indices = @transform_7, window_bounds = array<i64: 8, 128>}]} {
    %c0 = arith.constant 0 : index
    %c0_0 = arith.constant 0 : index
    %0 = vector.load %arg1[%c0, %c0_0] : memref<8x8xbf16, #tpu.memory_space<vmem>>, vector<8x8xbf16>
    %c0_1 = arith.constant 0 : index
    %c0_2 = arith.constant 0 : index
    %1 = vector.load %arg2[%c0_1, %c0_2] : memref<8x128xbf16, #tpu.memory_space<vmem>>, vector<8x128xbf16>
    %cst = arith.constant dense<0.000000e+00> : vector<8x128xf32>
    %2 = tpu.matmul %0, %1, %cst {dimension_numbers = #tpu.dot_dimension_numbers<[1], [0], [0], [1], [0, 0, 1, 1], [], []>} : vector<8x8xbf16>, vector<8x128xbf16>, vector<8x128xf32> -> vector<8x128xf32>
    %c0_3 = arith.constant 0 : index
    %c0_4 = arith.constant 0 : index
    %3 = vector.load %arg3[%c0_3, %c0_4] : memref<1x128xf32, #tpu.memory_space<vmem>>, vector<1x128xf32>
    %4 = vector.broadcast %3 : vector<1x128xf32> to vector<8x128xf32>
    %5 = arith.addf %2, %4 : vector<8x128xf32>
    %cst_5 = arith.constant 0.000000e+00 : f32
    %6 = vector.broadcast %cst_5 : f32 to vector<8x128xf32>
    %7 = arith.maximumf %5, %6 : vector<8x128xf32>
    %8 = arith.truncf %7 : vector<8x128xf32> to vector<8x128xbf16>
    %c0_6 = arith.constant 0 : index
    %c0_7 = arith.constant 0 : index
    %9 = vector.load %arg4[%c0_6, %c0_7] : memref<128x128xbf16, #tpu.memory_space<vmem>>, vector<128x128xbf16>
    %cst_8 = arith.constant dense<0.000000e+00> : vector<8x128xf32>
    %10 = tpu.matmul %8, %9, %cst_8 {dimension_numbers = #tpu.dot_dimension_numbers<[1], [0], [0], [1], [0, 0, 1, 1], [], []>} : vector<8x128xbf16>, vector<128x128xbf16>, vector<8x128xf32> -> vector<8x128xf32>
    %c0_9 = arith.constant 0 : index
    %c0_10 = arith.constant 0 : index
    %11 = vector.load %arg5[%c0_9, %c0_10] : memref<1x128xf32, #tpu.memory_space<vmem>>, vector<1x128xf32>
    %12 = vector.broadcast %11 : vector<1x128xf32> to vector<8x128xf32>
    %13 = arith.addf %10, %12 : vector<8x128xf32>
    %cst_11 = arith.constant 0.000000e+00 : f32
    %14 = vector.broadcast %cst_11 : f32 to vector<8x128xf32>
    %15 = arith.maximumf %13, %14 : vector<8x128xf32>
    %16 = arith.truncf %15 : vector<8x128xf32> to vector<8x128xbf16>
    %c0_12 = arith.constant 0 : index
    %c0_13 = arith.constant 0 : index
    %17 = vector.load %arg6[%c0_12, %c0_13] : memref<128x128xbf16, #tpu.memory_space<vmem>>, vector<128x128xbf16>
    %cst_14 = arith.constant dense<0.000000e+00> : vector<8x128xf32>
    %18 = tpu.matmul %16, %17, %cst_14 {dimension_numbers = #tpu.dot_dimension_numbers<[1], [0], [0], [1], [0, 0, 1, 1], [], []>} : vector<8x128xbf16>, vector<128x128xbf16>, vector<8x128xf32> -> vector<8x128xf32>
    %c0_15 = arith.constant 0 : index
    %c0_16 = arith.constant 0 : index
    %19 = vector.load %arg7[%c0_15, %c0_16] : memref<1x128xf32, #tpu.memory_space<vmem>>, vector<1x128xf32>
    %20 = vector.broadcast %19 : vector<1x128xf32> to vector<8x128xf32>
    %21 = arith.addf %18, %20 : vector<8x128xf32>
    %22 = tpu.iota {dimensions = array<i32: 1>} : vector<8x128xi32>
    %c4_i32 = arith.constant 4 : i32
    %23 = vector.broadcast %c4_i32 : i32 to vector<8x128xi32>
    %24 = arith.cmpi slt, %22, %23 : vector<8x128xi32>
    %cst_17 = arith.constant -1.000000e+30 : f32
    %25 = vector.broadcast %cst_17 : f32 to vector<8x128xf32>
    %26 = arith.select %24, %21, %25 : vector<8x128xi1>, vector<8x128xf32>
    %cst_18 = arith.constant dense<0xFF800000> : vector<8xf32>
    %27 = vector.multi_reduction <maximumf>, %26, %cst_18 [1] : vector<8x128xf32> to vector<8xf32>
    %28 = vector.shape_cast %27 : vector<8xf32> to vector<8x1xf32>
    %29 = vector.broadcast %28 : vector<8x1xf32> to vector<8x128xf32>
    %30 = arith.subf %21, %29 : vector<8x128xf32>
    %31 = math.exp %30 : vector<8x128xf32>
    %cst_19 = arith.constant 0.000000e+00 : f32
    %32 = vector.broadcast %cst_19 : f32 to vector<8x128xf32>
    %33 = arith.select %24, %31, %32 : vector<8x128xi1>, vector<8x128xf32>
    %cst_20 = arith.constant dense<0.000000e+00> : vector<8xf32>
    %34 = vector.multi_reduction <add>, %33, %cst_20 [1] : vector<8x128xf32> to vector<8xf32>
    %35 = vector.shape_cast %34 : vector<8xf32> to vector<8x1xf32>
    %36 = vector.broadcast %35 : vector<8x1xf32> to vector<8x128xf32>
    %37 = arith.divf %33, %36 : vector<8x128xf32>
    %38 = arith.select %24, %37, %21 : vector<8x128xi1>, vector<8x128xf32>
    %c0_21 = arith.constant 0 : index
    %c0_22 = arith.constant 0 : index
    %39 = vector.load %arg8[%c0_21, %c0_22] : memref<8x128xf32, #tpu.memory_space<vmem>>, vector<8x128xf32>
    tpu.vector_store %arg8[%c0_21, %c0_22], %38 {strides = array<i32>} : memref<8x128xf32, #tpu.memory_space<vmem>>, vector<8x128xf32>,
    return
  }
  func.func @transform_0(%arg0: i32) -> (i32, i32) {
    %c0_i32 = arith.constant 0 : i32
    %c0_i32_0 = arith.constant 0 : i32
    return %arg0, %c0_i32 : i32, i32
  }
  func.func @transform_1(%arg0: i32) -> (i32, i32) {
    %c0_i32 = arith.constant 0 : i32
    %c0_i32_0 = arith.constant 0 : i32
    %c0_i32_1 = arith.constant 0 : i32
    return %c0_i32, %c0_i32_0 : i32, i32
  }
  func.func @transform_2(%arg0: i32) -> (i32, i32) {
    %c0_i32 = arith.constant 0 : i32
    %c0_i32_0 = arith.constant 0 : i32
    %c0_i32_1 = arith.constant 0 : i32
    return %c0_i32, %c0_i32_0 : i32, i32
  }
  func.func @transform_3(%arg0: i32) -> (i32, i32) {
    %c0_i32 = arith.constant 0 : i32
    %c0_i32_0 = arith.constant 0 : i32
    %c0_i32_1 = arith.constant 0 : i32
    return %c0_i32, %c0_i32_0 : i32, i32
  }
  func.func @transform_4(%arg0: i32) -> (i32, i32) {
    %c0_i32 = arith.constant 0 : i32
    %c0_i32_0 = arith.constant 0 : i32
    %c0_i32_1 = arith.constant 0 : i32
    return %c0_i32, %c0_i32_0 : i32, i32
  }
  func.func @transform_5(%arg0: i32) -> (i32, i32) {
    %c0_i32 = arith.constant 0 : i32
    %c0_i32_0 = arith.constant 0 : i32
    %c0_i32_1 = arith.constant 0 : i32
    return %c0_i32, %c0_i32_0 : i32, i32
  }
  func.func @transform_6(%arg0: i32) -> (i32, i32) {
    %c0_i32 = arith.constant 0 : i32
    %c0_i32_0 = arith.constant 0 : i32
    %c0_i32_1 = arith.constant 0 : i32
    return %c0_i32, %c0_i32_0 : i32, i32
  }
  func.func @transform_7(%arg0: i32) -> (i32, i32) {
    %c0_i32 = arith.constant 0 : i32
    %c0_i32_0 = arith.constant 0 : i32
    return %arg0, %c0_i32 : i32, i32
  }
}

</mosaic_0001>

<llo_original>
// kernel: tpu_custom_call.1
$region0: #{tpu_custom_call.1}
  #allocation0 [shape = 'u32[]', space=smem, size = 0x4, offset = 0x4, fixed_abs, tag = 'smem constant byte address 0x4 - core index']
  #allocation1 [shape = 'u32[72,128]{1,0:T(1,128)}', space=vmem, size = 0x9000, scoped, tag = 'internal scratch']
  %s0 = inlined_call_operand.hbm [shape: bf16[8,8], index: 0, kind: input, shape index: {}]
  %s1 = inlined_call_operand.hbm [shape: bf16[8,128], index: 1, kind: input, shape index: {}]
  %s2 = inlined_call_operand.vmem [shape: f32[1,128], index: 2, kind: input, shape index: {}]
  %s3 = inlined_call_operand.hbm [shape: bf16[128,128], index: 3, kind: input, shape index: {}]
  %s4 = inlined_call_operand.vmem [shape: f32[1,128], index: 4, kind: input, shape index: {}]
  %s5 = inlined_call_operand.hbm [shape: bf16[128,128], index: 5, kind: input, shape index: {}]
  %s6 = inlined_call_operand.vmem [shape: f32[1,128], index: 6, kind: input, shape index: {}]
  %s7 = inlined_call_operand.hbm [shape: f32[8,128], index: 7, kind: output, shape index: {}]
  %s8 = sld [smem:[#allocation0]]
  $region54: #{tpu_custom_call.1} parent=0
    _
  %s10 = ssub.s32 1, %s8
  %s11 = scalar_select 0, %s10, %s8
  $region1: #{tpu_custom_call.1} parent=0
    #allocation2 [shape = 'u8[2048]{0}', space=vmem, size = 0x800, scoped, tag = 'input window, operand 0, single buffered']
    #allocation3 [shape = 's32[1]{0}', space=sflag, size = 0x4, scoped, tag = 'scoped memory for tpu_custom_call.1']
    #allocation4 [shape = 's32[1]{0}', space=sflag, size = 0x4, scoped, tag = 'scoped memory for tpu_custom_call.1']
    #allocation5 [shape = 'u8[2048]{0}', space=vmem, size = 0x800, scoped, tag = 'input window, operand 1, single buffered']
    #allocation6 [shape = 's32[1]{0}', space=sflag, size = 0x4, scoped, tag = 'scoped memory for tpu_custom_call.1']
    #allocation7 [shape = 'u8[32768]{0}', space=vmem, size = 0x8000, scoped, tag = 'input window, operand 3, single buffered']
    #allocation8 [shape = 'u8[32768]{0}', space=vmem, size = 0x8000, scoped, tag = 'input window, operand 5, single buffered']
    #allocation9 [shape = 's32[1]{0}', space=sflag, size = 0x4, scoped, tag = 'scoped memory for tpu_custom_call.1']
    #allocation10 [shape = 'u8[4096]{0}', space=vmem, size = 0x1000, scoped, tag = 'output window, operand 0, single buffered']
    %12 = vsyncpa [#allocation3], 0
    %13 = vsyncpa [#allocation6], 0
    %14 = vsyncpa [#allocation9], 0
    %15 = vsyncpa [#allocation4], 0
    // Predicated region
    $region2: #{tpu_custom_call.1} parent=1 // pred_check
      _
    $region3: #{tpu_custom_call.1} parent=1 // pred_check_branch
      %17 = sbr.rel (0) target = $region5
    $region4: #{tpu_custom_call.1} parent=1 // pred_region
      %19 = vsyncadd [#allocation3], 0
      %s21 = sshll.u32 %s0, 4
      %s22 = int_to_ptr.hbm [resolvable:$true] %s21
      %s23 = sshll.u32 [#allocation2], 4
      %s24 = int_to_ptr.vmem [resolvable:$true] %s23
      %26 = dma.hbm_to_vmem [thread:$0]  %s22, 64, %s24, [#allocation3]
    $region5: #{tpu_custom_call.1} parent=1 // pred_fallthru
      _
    // Predicated region
    $region6: #{tpu_custom_call.1} parent=1 // pred_check
      _
    $region7: #{tpu_custom_call.1} parent=1 // pred_check_branch
      %28 = sbr.rel (0) target = $region9
    $region8: #{tpu_custom_call.1} parent=1 // pred_region
      %30 = vsyncadd [#allocation6], 0
      %s32 = sshll.u32 %s1, 4
      %s33 = int_to_ptr.hbm [resolvable:$true] %s32
      %s34 = sshll.u32 [#allocation5], 4
      %s35 = int_to_ptr.vmem [resolvable:$true] %s34
      %37 = dma.hbm_to_vmem [thread:$0]  %s33, 64, %s35, [#allocation6]
    $region9: #{tpu_custom_call.1} parent=1 // pred_fallthru
      _
    // Predicated region
    $region10: #{tpu_custom_call.1} parent=1 // pred_check
      _
    $region11: #{tpu_custom_call.1} parent=1 // pred_check_branch
      %39 = sbr.rel (0) target = $region13
    $region12: #{tpu_custom_call.1} parent=1 // pred_region
      _
    $region13: #{tpu_custom_call.1} parent=1 // pred_fallthru
      _
    // Predicated region
    $region14: #{tpu_custom_call.1} parent=1 // pred_check
      _
    $region15: #{tpu_custom_call.1} parent=1 // pred_check_branch
      %41 = sbr.rel (0) target = $region17
    $region16: #{tpu_custom_call.1} parent=1 // pred_region
      %43 = vsyncadd [#allocation6], 0
      %s44 = sshll.u32 %s3, 4
      %s45 = int_to_ptr.hbm [resolvable:$true] %s44
      %s46 = sshll.u32 [#allocation7], 4
      %s47 = int_to_ptr.vmem [resolvable:$true] %s46
      %52 = dma.hbm_to_vmem [thread:$0]  %s45, 1024, %s47, [#allocation6], 64, 64, 4
    $region17: #{tpu_custom_call.1} parent=1 // pred_fallthru
      _
    // Predicated region
    $region18: #{tpu_custom_call.1} parent=1 // pred_check
      _
    $region19: #{tpu_custom_call.1} parent=1 // pred_check_branch
      %54 = sbr.rel (0) target = $region21
    $region20: #{tpu_custom_call.1} parent=1 // pred_region
      _
    $region21: #{tpu_custom_call.1} parent=1 // pred_fallthru
      _
    // Predicated region
    $region22: #{tpu_custom_call.1} parent=1 // pred_check
      _
    $region23: #{tpu_custom_call.1} parent=1 // pred_check_branch
      %56 = sbr.rel (0) target = $region25
    $region24: #{tpu_custom_call.1} parent=1 // pred_region
      %58 = vsyncadd [#allocation9], 0
      %s59 = sshll.u32 %s5, 4
      %s60 = int_to_ptr.hbm [resolvable:$true] %s59
      %s61 = sshll.u32 [#allocation8], 4
      %s62 = int_to_ptr.vmem [resolvable:$true] %s61
      %67 = dma.hbm_to_vmem [thread:$0]  %s60, 1024, %s62, [#allocation9], 64, 64, 4
    $region25: #{tpu_custom_call.1} parent=1 // pred_fallthru
      _
    // Predicated region
    $region26: #{tpu_custom_call.1} parent=1 // pred_check
      _
    $region27: #{tpu_custom_call.1} parent=1 // pred_check_branch
      %69 = sbr.rel (0) target = $region29
    $region28: #{tpu_custom_call.1} parent=1 // pred_region
      _
    $region29: #{tpu_custom_call.1} parent=1 // pred_fallthru
      _
    // Predicated region
    $region30: #{tpu_custom_call.1} parent=1 // pred_check
      _
    $region31: #{tpu_custom_call.1} parent=1 // pred_check_branch
      %71 = sbr.rel (0) target = $region33
    $region32: #{tpu_custom_call.1} parent=1 // pred_region
      %73 = dma.done [#allocation3], 64
    $region33: #{tpu_custom_call.1} parent=1 // pred_fallthru
      _
    // Predicated region
    $region34: #{tpu_custom_call.1} parent=1 // pred_check
      _
    $region35: #{tpu_custom_call.1} parent=1 // pred_check_branch
      %75 = sbr.rel (0) target = $region37
    $region36: #{tpu_custom_call.1} parent=1 // pred_region
      %77 = dma.done [#allocation6], 64
    $region37: #{tpu_custom_call.1} parent=1 // pred_fallthru
      _
    // Predicated region
    $region38: #{tpu_custom_call.1} parent=1 // pred_check
      _
    $region39: #{tpu_custom_call.1} parent=1 // pred_check_branch
      %79 = sbr.rel (0) target = $region41
    $region40: #{tpu_custom_call.1} parent=1 // pred_region
      %81 = dma.done [#allocation6], 1024
    $region41: #{tpu_custom_call.1} parent=1 // pred_fallthru
      _
    // Predicated region
    $region42: #{tpu_custom_call.1} parent=1 // pred_check
      _
    $region43: #{tpu_custom_call.1} parent=1 // pred_check_branch
      %83 = sbr.rel (0) target = $region45
    $region44: #{tpu_custom_call.1} parent=1 // pred_region
      %85 = dma.done [#allocation9], 1024
    $region45: #{tpu_custom_call.1} parent=1 // pred_fallthru
      _
    %v87 = vld [vmem:[#allocation2] sm:$0xf]
    %v88 = vld [vmem:[#allocation5] sm:$0xf]
    %v89 = vld [vmem:[%s2] sm:$0x1]
    %v91 = vperm.slane %v89, 0
    %vm93 = vcmask 64512
    %v95 = vsel %vm93, %v87, 0
    %vm97 = vcmask 1043456
    %v99 = vsel %vm97, %v88, 0
    %101 = vmatpush.bf16.msra.mxu0 0
    %102 = vmatpush.bf16.msra.mxu0 0
    %103 = vmatpush.bf16.msra.mxu0 0
    %104 = vmatpush.bf16.msra.mxu0 0
    %105 = vmatpush.bf16.msra.mxu0 0
    %106 = vmatpush.bf16.msra.mxu0 0
    %107 = vmatpush.bf16.msra.mxu0 0
    %108 = vmatpush.bf16.msra.mxu0 %v99
    %109 = vmatmul.bf16.gmra.mxu0 %v95
    %v110 = vpop.f32.mrf.mxu0
    %v111 = vadd.f32 %v91, %v110
    %v112 = vpop.f32.mrf.mxu0
    %113 = vdwg.mxu0
    %v114 = vmax.f32 %v111, 0.0
    %v115 = vpack.c.bf16 %v114, %v114
    %v116 = vld [vmem:[#allocation7] sm:$0xf]
    %v117 = vld [vmem:[#allocation7 + $0x4] sm:$0xf]
    %v118 = vld [vmem:[#allocation7 + $0x8] sm:$0xf]
    %v119 = vld [vmem:[#allocation7 + $0xc] sm:$0xf]
    %v120 = vld [vmem:[#allocation7 + $0x10] sm:$0xf]
    %v121 = vld [vmem:[#allocation7 + $0x14] sm:$0xf]
    %v122 = vld [vmem:[#allocation7 + $0x18] sm:$0xf]
    %v123 = vld [vmem:[#allocation7 + $0x1c] sm:$0xf]
    %v124 = vld [vmem:[#allocation7 + $0x20] sm:$0xf]
    %v125 = vld [vmem:[#allocation7 + $0x24] sm:$0xf]
    %v126 = vld [vmem:[#allocation7 + $0x28] sm:$0xf]
    %v127 = vld [vmem:[#allocation7 + $0x2c] sm:$0xf]
    %v128 = vld [vmem:[#allocation7 + $0x30] sm:$0xf]
    %v129 = vld [vmem:[#allocation7 + $0x34] sm:$0xf]
    %v130 = vld [vmem:[#allocation7 + $0x38] sm:$0xf]
    %v131 = vld [vmem:[#allocation7 + $0x3c] sm:$0xf]
    %v132 = vld [vmem:[%s4] sm:$0x1]
    %v134 = vperm.slane %v132, 0
    %v152 = vunpack.c.l.b16 %v116
    %v153 = vunpack.c.l.b16 %v117
    %v154 = vunpack.c.l.b16 %v118
    %v155 = vunpack.c.l.b16 %v119
    %v156 = vunpack.c.l.b16 %v120
    %v157 = vunpack.c.l.b16 %v121
    %v158 = vunpack.c.l.b16 %v122
    %v159 = vunpack.c.l.b16 %v123
    %v160 = vunpack.c.l.b16 %v124
    %v161 = vunpack.c.l.b16 %v125
    %v162 = vunpack.c.l.b16 %v126
    %v163 = vunpack.c.l.b16 %v127
    %v164 = vunpack.c.l.b16 %v128
    %v165 = vunpack.c.l.b16 %v129
    %v166 = vunpack.c.l.b16 %v130
    %v167 = vunpack.c.l.b16 %v131
    %v168 = vpack.c.b16 %v153, %v152
    %v169 = vpack.c.b16 %v155, %v154
    %v170 = vpack.c.b16 %v157, %v156
    %v171 = vpack.c.b16 %v159, %v158
    %v172 = vpack.c.b16 %v161, %v160
    %v173 = vpack.c.b16 %v163, %v162
    %v174 = vpack.c.b16 %v165, %v164
    %v175 = vpack.c.b16 %v167, %v166
    %184 = vmatpush.bf16.msra.mxu0 %v175
    %185 = vmatpush.bf16.msra.mxu0 %v174
    %186 = vmatpush.bf16.msra.mxu0 %v173
    %187 = vmatpush.bf16.msra.mxu0 %v172
    %188 = vmatpush.bf16.msra.mxu0 %v171
    %189 = vmatpush.bf16.msra.mxu0 %v170
    %190 = vmatpush.bf16.msra.mxu0 %v169
    %191 = vmatpush.bf16.msra.mxu0 %v168
    %192 = vmatmul.bf16.gmra.mxu0 %v115
    %v193 = vpop.f32.mrf.mxu0
    %v194 = vadd.f32 %v134, %v193
    %v195 = vpop.f32.mrf.mxu0
    %196 = vdwg.mxu0
    %v197 = vmax.f32 %v194, 0.0
    %v198 = vpack.c.bf16 %v197, %v197
    %v199 = vld [vmem:[#allocation8] sm:$0xf]
    %v200 = vld [vmem:[#allocation8 + $0x4] sm:$0xf]
    %v201 = vld [vmem:[#allocation8 + $0x8] sm:$0xf]
    %v202 = vld [vmem:[#allocation8 + $0xc] sm:$0xf]
    %v203 = vld [vmem:[#allocation8 + $0x10] sm:$0xf]
    %v204 = vld [vmem:[#allocation8 + $0x14] sm:$0xf]
    %v205 = vld [vmem:[#allocation8 + $0x18] sm:$0xf]
    %v206 = vld [vmem:[#allocation8 + $0x1c] sm:$0xf]
    %v207 = vld [vmem:[#allocation8 + $0x20] sm:$0xf]
    %v208 = vld [vmem:[#allocation8 + $0x24] sm:$0xf]
    %v209 = vld [vmem:[#allocation8 + $0x28] sm:$0xf]
    %v210 = vld [vmem:[#allocation8 + $0x2c] sm:$0xf]
    %v211 = vld [vmem:[#allocation8 + $0x30] sm:$0xf]
    %v212 = vld [vmem:[#allocation8 + $0x34] sm:$0xf]
    %v213 = vld [vmem:[#allocation8 + $0x38] sm:$0xf]
    %v214 = vld [vmem:[#allocation8 + $0x3c] sm:$0xf]
    %v215 = vld [vmem:[%s6] sm:$0x1]
    %v217 = vperm.slane %v215, 0
    %v235 = vunpack.c.l.b16 %v199
    %v236 = vunpack.c.l.b16 %v200
    %v237 = vunpack.c.l.b16 %v201
    %v238 = vunpack.c.l.b16 %v202
    %v239 = vunpack.c.l.b16 %v203
    %v240 = vunpack.c.l.b16 %v204
    %v241 = vunpack.c.l.b16 %v205
    %v242 = vunpack.c.l.b16 %v206
    %v243 = vunpack.c.l.b16 %v207
    %v244 = vunpack.c.l.b16 %v208
    %v245 = vunpack.c.l.b16 %v209
    %v246 = vunpack.c.l.b16 %v210
    %v247 = vunpack.c.l.b16 %v211
    %v248 = vunpack.c.l.b16 %v212
    %v249 = vunpack.c.l.b16 %v213
    %v250 = vunpack.c.l.b16 %v214
    %v251 = vpack.c.b16 %v236, %v235
    %v252 = vpack.c.b16 %v238, %v237
    %v253 = vpack.c.b16 %v240, %v239
    %v254 = vpack.c.b16 %v242, %v241
    %v255 = vpack.c.b16 %v244, %v243
    %v256 = vpack.c.b16 %v246, %v245
    %v257 = vpack.c.b16 %v248, %v247
    %v258 = vpack.c.b16 %v250, %v249
    %267 = vmatpush.bf16.msra.mxu0 %v258
    %268 = vmatpush.bf16.msra.mxu0 %v257
    %269 = vmatpush.bf16.msra.mxu0 %v256
    %270 = vmatpush.bf16.msra.mxu0 %v255
    %271 = vmatpush.bf16.msra.mxu0 %v254
    %272 = vmatpush.bf16.msra.mxu0 %v253
    %273 = vmatpush.bf16.msra.mxu0 %v252
    %274 = vmatpush.bf16.msra.mxu0 %v251
    %275 = vmatmul.bf16.gmra.mxu0 %v198
    %v276 = vpop.f32.mrf.mxu0
    %v277 = vadd.f32 %v217, %v276
    %v278 = vpop.f32.mrf.mxu0
    %279 = vdwg.mxu0
    %v280 = vlaneseq
    %v281 = vand.u32 %v280, 127
    %vm282 = vcmp.lt.s32.totalorder %v281, 4
    %v283 = vsel %vm282, %v277, -1e+30
    %284 = vmax.xlane.f32.xlu0 %v283
    %v285 = vpop.xlane.xlu0 %284
    %v286 = vsub.f32 %v277, %v285
    %v287 = vmul.f32 %v286, 1.442695
    %v288 = vpow.pop %v287
    %v289 = vsel %vm282, %v288, 0.0
    %290 = vadd.xlane.f32.xlu0 %v289
    %v291 = vpop.xlane.xlu0 %290
    %v292 = vrcp.pop %v291
    %v293 = vmul.f32 %v291, %v292
    %v294 = vsub.f32 1.0, %v293
    %v295 = vmul.f32 %v292, %v294
    %v296 = vadd.f32 %v292, %v295
    %vm297 = vweird.f32 %v291
    %vm298 = vweird.f32 %v292
    %vm299 = vmor %vm297, %vm298
    %v300 = vsel %vm299, %v292, %v296
    %v301 = vand.u32 2147483647, %v291
    %vm302 = vcmp.eq.f32.partialorder %v301, 8.507059e+37
    %v303 = vand.u32 %v291, 2147483648
    %v304 = vor.u32 1.1754944e-38, %v303
    %v305 = vsel %vm302, %v304, %v300
    %v306 = vmul.f32 %v289, %v305
    %v307 = vsel %vm282, %v306, %v277
    %308 = vst [vmem:[#allocation10] sm:$0xff] %v307
    // Predicated region
    $region46: #{tpu_custom_call.1} parent=1 // pred_check
      _
    $region47: #{tpu_custom_call.1} parent=1 // pred_check_branch
      %310 = sbr.rel (0) target = $region49
    $region48: #{tpu_custom_call.1} parent=1 // pred_region
      %312 = vsyncadd [#allocation4], 0
      %s314 = sshll.u32 [#allocation10], 4
      %s315 = int_to_ptr.vmem [resolvable:$true] %s314
      %s316 = sshll.u32 %s7, 4
      %s317 = int_to_ptr.hbm [resolvable:$true] %s316
      %319 = dma.vmem_to_hbm [thread:$0]  %s315, 128, %s317, [#allocation4]
    $region49: #{tpu_custom_call.1} parent=1 // pred_fallthru
      _
    // Predicated region
    $region50: #{tpu_custom_call.1} parent=1 // pred_check
      _
    $region51: #{tpu_custom_call.1} parent=1 // pred_check_branch
      %321 = sbr.rel (0) target = $region53
    $region52: #{tpu_custom_call.1} parent=1 // pred_region
      %323 = dma.done [#allocation4], 128
    $region53: #{tpu_custom_call.1} parent=1 // pred_fallthru
      _
    %324 = vsyncpa [#allocation3], 1
    %325 = vsyncpa [#allocation6], 1
    %326 = vsyncpa [#allocation9], 1
    %327 = vsyncpa [#allocation4], 1

</llo_original>
